<compile_context>
chip_gen: v7x
topology: tpu7x:2x2x1
jax: 0.10.0
libtpu: 0.0.40
codegen_flags: <defaults>
</compile_context>

<pallas_src>
import numpy as np
import jax
import jax.numpy as jnp
from jax.experimental import pallas as pl
from jax.experimental.pallas import tpu as pltpu

# ---------------- model hyper-parameters (small synthetic sizes) -------------
EMBED_DIM   = 128   # embed_dim
HIDDEN_CONV = 8     # hidden_size_conv
KERNEL_SIZE = 3     # kernel_size
SEQ_LEN     = 16    # simulated curve length (PHYSICAL_SEQ_LEN stand-in)
OP_SEQ      = 8     # operational sequence length
OP_FEAT     = 4     # operational features per time step
BATCH       = 8     # operational batch size
QUEUE       = 8     # queue_size (number of simulated negatives/positives)
TEMPERATURE = 0.07

# ---------------- packed parameter-slab layout (lane dim = EMBED_DIM) --------
_F         = OP_SEQ * OP_FEAT                 # 32  operational input features
_LO        = SEQ_LEN - KERNEL_SIZE + 1        # 14  conv output length (valid)
_LOC       = _LO * HIDDEN_CONV                # 112
_LOC_PAD   = 128                              # lane-dense padding of Lo*C
_ROW_WOP   = 0                                # w_op         rows [  0,  32)
_ROW_WC    = _ROW_WOP + _F                    # w_im2col     rows [ 32,  48)
_ROW_WP    = _ROW_WC + SEQ_LEN                # w_proj_fold  rows [ 48, 176)
_ROW_BIAS  = _ROW_WP + _LOC_PAD               # bias/scale   rows [176, 184)
_SLAB_ROWS = _ROW_BIAS + 8                    # 184 (multiple of 8 sublanes)


# ----------------------------- fused Pallas kernel ----------------------------
def accept_fused_kernel(x_op_ref, x_sim_ref, slab_ref, lo_ref):
    # x_op: (B, F)   x_sim: (Q, L)   slab: (184, 128) packed params
    # output: lo (B, Q) = exp(logit_scale) * op_n @ sim_n.T

    # -- unpack the parameter slab with static, sublane-aligned ref slices ----
    w_op  = slab_ref[_ROW_WOP:_ROW_WC, :]          # (F, D)
    w_c   = slab_ref[_ROW_WC:_ROW_WP, :]           # (L, LoC_pad)   im2col conv
    w_p   = slab_ref[_ROW_WP:_ROW_BIAS, :]         # (LoC_pad, D)   mean-pool folded
    b_op  = slab_ref[_ROW_BIAS + 0:_ROW_BIAS + 1, :]   # (1, D)
    b_c   = slab_ref[_ROW_BIAS + 1:_ROW_BIAS + 2, :]   # (1, LoC_pad)
    b_p   = slab_ref[_ROW_BIAS + 2:_ROW_BIAS + 3, :]   # (1, D)
    scale = slab_ref[_ROW_BIAS + 3:_ROW_BIAS + 4, :]   # (1, D) = exp(logit_scale)

    # TODO(synk): TemporalFusionTransformer has no clean Pallas equivalent;
    # the operational encoder is stood-in by a single linear projection.
    op = jnp.dot(x_op_ref[...], w_op,
                 preferred_element_type=jnp.float32) + b_op          # (B, D)

    # simulated encoder: im2col conv + bias + ReLU; global mean pool is folded
    # into the (LoC_pad, D) projection.  Everything is lane-dense (128 lanes).
    h = jnp.maximum(
        jnp.dot(x_sim_ref[...], w_c,
                preferred_element_type=jnp.float32) + b_c, 0.0)      # (Q, LoC_pad)
    sim = jnp.dot(h, w_p, preferred_element_type=jnp.float32) + b_p  # (Q, D)

    # CLIP head: L2-normalize (f32 VPU/EUP math), fold exp(logit_scale) into
    # the normalized operational features, single MXU matmul for the logits.
    op_n = op * (scale * jax.lax.rsqrt(jnp.sum(op * op, axis=1, keepdims=True)))
    sim_n = sim * jax.lax.rsqrt(jnp.sum(sim * sim, axis=1, keepdims=True))

    lo_ref[...] = jax.lax.dot_general(
        op_n, sim_n, (((1,), (1,)), ((), ())),
        preferred_element_type=jnp.float32)                          # (B, Q)


# ------------------------------ param preparation -----------------------------
def prepare_accept_params(params, L=SEQ_LEN):
    """One-time (NOT per-forward) packing of all ACCEPT parameters into a
    single lane-dense (184, 128) f32 slab.  Folds: K-tap valid conv -> im2col
    matmul, global mean pool -> tiled projection, exp(logit_scale) -> a bias
    row.  Pure numpy so nothing lands on the jitted hot path."""
    w_op   = np.asarray(params["w_op"],   np.float32)   # (F, D)
    b_op   = np.asarray(params["b_op"],   np.float32)   # (1, D)
    w_conv = np.asarray(params["w_conv"], np.float32)   # (K, C)
    b_conv = np.asarray(params["b_conv"], np.float32)   # (1, C)
    w_proj = np.asarray(params["w_proj"], np.float32)   # (C, D)
    b_proj = np.asarray(params["b_proj"], np.float32)   # (1, D)

    K, C = w_conv.shape
    F, D = w_op.shape
    Lo = L - K + 1
    assert D == EMBED_DIM and F == _F and L == SEQ_LEN
    assert Lo * C == _LOC and _LOC <= _LOC_PAD and _LOC_PAD == D

    # im2col conv:  h[q, t*C + c] = sum_k x_sim[q, t + k] * w_conv[k, c]
    w_im2col = np.zeros((L, _LOC_PAD), np.float32)
    for t in range(Lo):
        for k in range(K):
            w_im2col[t + k, t * C:(t + 1) * C] = w_conv[k]
    b_im2col = np.zeros((1, _LOC_PAD), np.float32)
    b_im2col[0, :_LOC] = np.tile(b_conv[0], Lo)

    # global mean pool over Lo folded into projection (zero rows in padding).
    w_proj_fold = np.zeros((_LOC_PAD, D), np.float32)
    w_proj_fold[:_LOC] = np.tile(w_proj / Lo, (Lo, 1))

    scale = float(np.exp(np.asarray(params["logit_scale"], np.float32)[0]))

    bias_tile = np.zeros((8, D), np.float32)
    bias_tile[0] = b_op[0]
    bias_tile[1] = b_im2col[0]
    bias_tile[2] = b_proj[0]
    bias_tile[3] = scale

    slab = np.concatenate([w_op, w_im2col, w_proj_fold, bias_tile], axis=0)
    assert slab.shape == (_SLAB_ROWS, D)
    return jnp.asarray(slab)


# --------------------------------- forward ------------------------------------
_VMEM = pl.BlockSpec(memory_space=pltpu.MemorySpace.VMEM)


@jax.jit
def accept_forward(slab, x_op, x_sim):
    """ACCEPT forward: two encoders + CLIP contrastive head, one fused kernel."""
    B, F = x_op.shape
    Q, L = x_sim.shape
    D = EMBED_DIM

    flops = 2 * (B * F * D + Q * L * _LOC_PAD + Q * _LOC_PAD * D + B * Q * D)
    bytes_accessed = 4 * (x_op.size + x_sim.size + _SLAB_ROWS * D + B * Q)

    lo = pl.pallas_call(
        accept_fused_kernel,
        out_shape=jax.ShapeDtypeStruct((B, Q), jnp.float32),
        in_specs=[_VMEM, _VMEM, _VMEM],
        out_specs=_VMEM,
        cost_estimate=pl.CostEstimate(flops=flops,
                                      transcendentals=B + Q,
                                      bytes_accessed=bytes_accessed),
    )(x_op, x_sim, slab)

    # logits_per_simulated is exactly the transpose -> do it in XLA (free for
    # an 8x8), instead of a second in-kernel matmul + masked store + DMA.
    return lo, lo.T


# ------------------------------- reference -----------------------------------
def accept_reference(params, x_op, x_sim):
    op = np.asarray(x_op) @ np.asarray(params["w_op"]) + np.asarray(params["b_op"])
    K, C = params["w_conv"].shape
    Q, L = x_sim.shape
    Lo = L - K + 1
    acc = np.zeros((Q, Lo, C), np.float32)
    for k in range(K):
        acc += (np.asarray(x_sim)[:, k:k + Lo, None]
                * np.asarray(params["w_conv"])[k][None, None, :])
    h = np.maximum(acc + np.asarray(params["b_conv"])[None], 0.0)
    sim = h.mean(axis=1) @ np.asarray(params["w_proj"]) + np.asarray(params["b_proj"])
    op_n = op / np.linalg.norm(op, axis=1, keepdims=True)
    sim_n = sim / np.linalg.norm(sim, axis=1, keepdims=True)
    scale = np.exp(np.asarray(params["logit_scale"])[0])
    lo = scale * op_n @ sim_n.T
    return lo, lo.T


# --------------------------------- main ---------------------------------------
if __name__ == "__main__":
    key = jax.random.PRNGKey(0)
    k1, k2, k3, k4, k5 = jax.random.split(key, 5)

    F = OP_SEQ * OP_FEAT
    params = {
        # operational encoder (TFT stand-in: linear)
        "w_op":   jax.random.normal(k1, (F, EMBED_DIM), jnp.float32) * 0.1,
        "b_op":   jnp.zeros((1, EMBED_DIM), jnp.float32),
        # simulated encoder (ConvModule)
        "w_conv": jax.random.normal(k2, (KERNEL_SIZE, HIDDEN_CONV), jnp.float32) * 0.3,
        "b_conv": jnp.full((1, HIDDEN_CONV), 0.05, jnp.float32),
        "w_proj": jax.random.normal(k3, (HIDDEN_CONV, EMBED_DIM), jnp.float32) * 0.2,
        "b_proj": jnp.zeros((1, EMBED_DIM), jnp.float32),
        # CLIP logit scale = log(1 / temperature)
        "logit_scale": jnp.array([np.log(1.0 / TEMPERATURE)], jnp.float32),
    }

    # one-time parameter packing (hoisted off the per-call hot path)
    slab = prepare_accept_params(params)

    # operational: dict-of-tensors in PyTorch -> flattened (B, seq*feat) here
    x_op = jax.random.normal(k4, (BATCH, F), jnp.float32)
    # simulated: PyTorch (Q, 1, L) with channel=1 -> squeezed to (Q, L)
    x_sim = jax.random.normal(k5, (QUEUE, SEQ_LEN), jnp.float32)

    logits_per_operational, logits_per_simulated = jax.block_until_ready(
        accept_forward(slab, x_op, x_sim))

    ref_lo, ref_ls = accept_reference(params, x_op, x_sim)
    np.testing.assert_allclose(np.asarray(logits_per_operational), ref_lo,
                               rtol=1e-4, atol=1e-4)
    np.testing.assert_allclose(np.asarray(logits_per_simulated), ref_ls,
                               rtol=1e-4, atol=1e-4)

    print("KERNEL_OK")
</pallas_src>

<mosaic_0001>
module attributes {stable_mosaic.version = 11 : i64} {
  func.func @accept_fused_kernel(%arg0: memref<8x32xf32, #tpu.memory_space<vmem>>, %arg1: memref<8x16xf32, #tpu.memory_space<vmem>>, %arg2: memref<184x128xf32, #tpu.memory_space<vmem>>, %arg3: memref<8x8xf32, #tpu.memory_space<vmem>>) attributes {dimension_semantics = [], scalar_prefetch = 0 : i64, scratch_operands = 0 : i64, tpu.core_type = #tpu.core_type<tc>} {
    %c0 = arith.constant 0 : index
    %c0_0 = arith.constant 0 : index
    %0 = vector.load %arg2[%c0, %c0_0] : memref<184x128xf32, #tpu.memory_space<vmem>>, vector<32x128xf32>
    %c32 = arith.constant 32 : index
    %c0_1 = arith.constant 0 : index
    %1 = vector.load %arg2[%c32, %c0_1] : memref<184x128xf32, #tpu.memory_space<vmem>>, vector<16x128xf32>
    %c48 = arith.constant 48 : index
    %c0_2 = arith.constant 0 : index
    %2 = vector.load %arg2[%c48, %c0_2] : memref<184x128xf32, #tpu.memory_space<vmem>>, vector<128x128xf32>
    %c176 = arith.constant 176 : index
    %c0_3 = arith.constant 0 : index
    %3 = vector.load %arg2[%c176, %c0_3] : memref<184x128xf32, #tpu.memory_space<vmem>>, vector<1x128xf32>
    %c177 = arith.constant 177 : index
    %c0_4 = arith.constant 0 : index
    %4 = vector.load %arg2[%c177, %c0_4] : memref<184x128xf32, #tpu.memory_space<vmem>>, vector<1x128xf32>
    %c178 = arith.constant 178 : index
    %c0_5 = arith.constant 0 : index
    %5 = vector.load %arg2[%c178, %c0_5] : memref<184x128xf32, #tpu.memory_space<vmem>>, vector<1x128xf32>
    %c179 = arith.constant 179 : index
    %c0_6 = arith.constant 0 : index
    %6 = vector.load %arg2[%c179, %c0_6] : memref<184x128xf32, #tpu.memory_space<vmem>>, vector<1x128xf32>
    %c0_7 = arith.constant 0 : index
    %c0_8 = arith.constant 0 : index
    %7 = vector.load %arg0[%c0_7, %c0_8] : memref<8x32xf32, #tpu.memory_space<vmem>>, vector<8x32xf32>
    %cst = arith.constant dense<0.000000e+00> : vector<8x128xf32>
    %8 = tpu.matmul %7, %0, %cst {dimension_numbers = #tpu.dot_dimension_numbers<[1], [0], [0], [1], [0, 0, 1, 1], [], []>} : vector<8x32xf32>, vector<32x128xf32>, vector<8x128xf32> -> vector<8x128xf32>
    %9 = vector.broadcast %3 : vector<1x128xf32> to vector<8x128xf32>
    %10 = arith.addf %8, %9 : vector<8x128xf32>
    %c0_9 = arith.constant 0 : index
    %c0_10 = arith.constant 0 : index
    %11 = vector.load %arg1[%c0_9, %c0_10] : memref<8x16xf32, #tpu.memory_space<vmem>>, vector<8x16xf32>
    %cst_11 = arith.constant dense<0.000000e+00> : vector<8x128xf32>
    %12 = tpu.matmul %11, %1, %cst_11 {dimension_numbers = #tpu.dot_dimension_numbers<[1], [0], [0], [1], [0, 0, 1, 1], [], []>} : vector<8x16xf32>, vector<16x128xf32>, vector<8x128xf32> -> vector<8x128xf32>
    %13 = vector.broadcast %4 : vector<1x128xf32> to vector<8x128xf32>
    %14 = arith.addf %12, %13 : vector<8x128xf32>
    %cst_12 = arith.constant 0.000000e+00 : f32
    %15 = vector.broadcast %cst_12 : f32 to vector<8x128xf32>
    %16 = arith.maximumf %14, %15 : vector<8x128xf32>
    %cst_13 = arith.constant dense<0.000000e+00> : vector<8x128xf32>
    %17 = tpu.matmul %16, %2, %cst_13 {dimension_numbers = #tpu.dot_dimension_numbers<[1], [0], [0], [1], [0, 0, 1, 1], [], []>} : vector<8x128xf32>, vector<128x128xf32>, vector<8x128xf32> -> vector<8x128xf32>
    %18 = vector.broadcast %5 : vector<1x128xf32> to vector<8x128xf32>
    %19 = arith.addf %17, %18 : vector<8x128xf32>
    %20 = arith.mulf %10, %10 : vector<8x128xf32>
    %cst_14 = arith.constant dense<0.000000e+00> : vector<8xf32>
    %21 = vector.multi_reduction <add>, %20, %cst_14 [1] : vector<8x128xf32> to vector<8xf32>
    %22 = vector.shape_cast %21 : vector<8xf32> to vector<8x1xf32>
    %23 = math.rsqrt %22 : vector<8x1xf32>
    %24 = vector.broadcast %6 : vector<1x128xf32> to vector<8x128xf32>
    %25 = vector.broadcast %23 : vector<8x1xf32> to vector<8x128xf32>
    %26 = arith.mulf %24, %25 : vector<8x128xf32>
    %27 = arith.mulf %10, %26 : vector<8x128xf32>
    %28 = arith.mulf %19, %19 : vector<8x128xf32>
    %cst_15 = arith.constant dense<0.000000e+00> : vector<8xf32>
    %29 = vector.multi_reduction <add>, %28, %cst_15 [1] : vector<8x128xf32> to vector<8xf32>
    %30 = vector.shape_cast %29 : vector<8xf32> to vector<8x1xf32>
    %31 = math.rsqrt %30 : vector<8x1xf32>
    %32 = vector.broadcast %31 : vector<8x1xf32> to vector<8x128xf32>
    %33 = arith.mulf %19, %32 : vector<8x128xf32>
    %cst_16 = arith.constant dense<0.000000e+00> : vector<8x8xf32>
    %34 = tpu.matmul %27, %33, %cst_16 {dimension_numbers = #tpu.dot_dimension_numbers<[1], [1], [0], [0], [0, 0, 1, 0], [], []>} : vector<8x128xf32>, vector<8x128xf32>, vector<8x8xf32> -> vector<8x8xf32>
    %c0_17 = arith.constant 0 : index
    %c0_18 = arith.constant 0 : index
    %35 = vector.load %arg3[%c0_17, %c0_18] : memref<8x8xf32, #tpu.memory_space<vmem>>, vector<8x8xf32>
    tpu.vector_store %arg3[%c0_17, %c0_18], %34 {strides = array<i32>} : memref<8x8xf32, #tpu.memory_space<vmem>>, vector<8x8xf32>,
    return
  }
}

</mosaic_0001>

<llo_original>
// kernel: accept_forward.1
$region0: #{accept_forward.1}
  #allocation0 [shape = 'u32[]', space=smem, size = 0x4, offset = 0x4, fixed_abs, tag = 'smem constant byte address 0x4 - core index']
  #allocation1 [shape = 'u32[144,128]{1,0:T(1,128)}', space=vmem, size = 0x12000, scoped, tag = 'internal scratch']
  %s0 = inlined_call_operand.hbm [shape: f32[8,32], index: 0, kind: input, shape index: {}]
  %s1 = inlined_call_operand.hbm [shape: f32[8,16], index: 1, kind: input, shape index: {}]
  %s2 = inlined_call_operand.hbm [shape: f32[184,128], index: 2, kind: input, shape index: {}]
  %s3 = inlined_call_operand.vmem [shape: f32[8,8], index: 3, kind: output, shape index: {}]
  %s4 = sld [smem:[#allocation0]]
  $region34: #{accept_forward.1} parent=0
    _
  %s6 = ssub.s32 1, %s4
  %s7 = scalar_select 0, %s6, %s4
  $region1: #{accept_forward.1} parent=0
    #allocation2 [shape = 'u8[4096]{0}', space=vmem, size = 0x1000, scoped, tag = 'input window, operand 0, single buffered']
    #allocation3 [shape = 's32[1]{0}', space=sflag, size = 0x4, scoped, tag = 'scoped memory for accept_forward.1']
    #allocation4 [shape = 'u8[4096]{0}', space=vmem, size = 0x1000, scoped, tag = 'input window, operand 1, single buffered']
    #allocation5 [shape = 's32[1]{0}', space=sflag, size = 0x4, scoped, tag = 'scoped memory for accept_forward.1']
    #allocation6 [shape = 'u8[94208]{0}', space=vmem, size = 0x17000, scoped, tag = 'input window, operand 2, single buffered']
    %8 = vsyncpa [#allocation3], 0
    %9 = vsyncpa [#allocation5], 0
    // Predicated region
    $region2: #{accept_forward.1} parent=1 // pred_check
      _
    $region3: #{accept_forward.1} parent=1 // pred_check_branch
      %11 = sbr.rel (0) target = $region5
    $region4: #{accept_forward.1} parent=1 // pred_region
      %s13 = ssub.s32 128, 128
      %14 = vsyncadd [#allocation3], %s13
      %s16 = sshll.u32 [#allocation2], 4
      %s17 = int_to_ptr.vmem [resolvable:$true] %s16
      %19 = dma.hbm_to_vmem [thread:$0]  %s0, 128, %s17, [#allocation3]
    $region5: #{accept_forward.1} parent=1 // pred_fallthru
      _
    // Predicated region
    $region6: #{accept_forward.1} parent=1 // pred_check
      _
    $region7: #{accept_forward.1} parent=1 // pred_check_branch
      %21 = sbr.rel (0) target = $region9
    $region8: #{accept_forward.1} parent=1 // pred_region
      %s23 = ssub.s32 128, 128
      %24 = vsyncadd [#allocation5], %s23
      %s26 = sshll.u32 [#allocation4], 4
      %s27 = int_to_ptr.vmem [resolvable:$true] %s26
      %29 = dma.hbm_to_vmem [thread:$0]  %s1, 128, %s27, [#allocation5]
    $region9: #{accept_forward.1} parent=1 // pred_fallthru
      _
    // Predicated region
    $region10: #{accept_forward.1} parent=1 // pred_check
      _
    $region11: #{accept_forward.1} parent=1 // pred_check_branch
      %31 = sbr.rel (0) target = $region13
    $region12: #{accept_forward.1} parent=1 // pred_region
      %s33 = ssub.s32 2944, 2944
      %34 = vsyncadd [#allocation5], %s33
      %s35 = sshll.u32 [#allocation6], 4
      %s36 = int_to_ptr.vmem [resolvable:$true] %s35
      %41 = dma.hbm_to_vmem [thread:$0]  %s2, 2944, %s36, [#allocation5], 128, 128, 8
    $region13: #{accept_forward.1} parent=1 // pred_fallthru
      _
    // Predicated region
    $region14: #{accept_forward.1} parent=1 // pred_check
      _
    $region15: #{accept_forward.1} parent=1 // pred_check_branch
      %43 = sbr.rel (0) target = $region17
    $region16: #{accept_forward.1} parent=1 // pred_region
      %44 = dma.done [#allocation3], 128
    $region17: #{accept_forward.1} parent=1 // pred_fallthru
      _
    // Predicated region
    $region18: #{accept_forward.1} parent=1 // pred_check
      _
    $region19: #{accept_forward.1} parent=1 // pred_check_branch
      %46 = sbr.rel (0) target = $region21
    $region20: #{accept_forward.1} parent=1 // pred_region
      %47 = dma.done [#allocation5], 128
    $region21: #{accept_forward.1} parent=1 // pred_fallthru
      _
    // Predicated region
    $region22: #{accept_forward.1} parent=1 // pred_check
      _
    $region23: #{accept_forward.1} parent=1 // pred_check_branch
      %49 = sbr.rel (0) target = $region25
    $region24: #{accept_forward.1} parent=1 // pred_region
      %50 = dma.done [#allocation5], 2944
    $region25: #{accept_forward.1} parent=1 // pred_fallthru
      _
    %v51 = vld [vmem:[#allocation6] sm:$0xff]
    %v52 = vld [vmem:[#allocation6 + $0x8] sm:$0xff]
    %v53 = vld [vmem:[#allocation6 + $0x10] sm:$0xff]
    %v54 = vld [vmem:[#allocation6 + $0x18] sm:$0xff]
    %v55 = vld [vmem:[#allocation6 + $0x20] sm:$0xff]
    %v56 = vld [vmem:[#allocation6 + $0x28] sm:$0xff]
    %v57 = vld [vmem:[#allocation6 + $0x30] sm:$0xff]
    %v58 = vld [vmem:[#allocation6 + $0x38] sm:$0xff]
    %v59 = vld [vmem:[#allocation6 + $0x40] sm:$0xff]
    %v60 = vld [vmem:[#allocation6 + $0x48] sm:$0xff]
    %v61 = vld [vmem:[#allocation6 + $0x50] sm:$0xff]
    %v62 = vld [vmem:[#allocation6 + $0x58] sm:$0xff]
    %v63 = vld [vmem:[#allocation6 + $0x60] sm:$0xff]
    %v64 = vld [vmem:[#allocation6 + $0x68] sm:$0xff]
    %v65 = vld [vmem:[#allocation6 + $0x70] sm:$0xff]
    %v66 = vld [vmem:[#allocation6 + $0x78] sm:$0xff]
    %v67 = vld [vmem:[#allocation6 + $0x80] sm:$0xff]
    %v68 = vld [vmem:[#allocation6 + $0x88] sm:$0xff]
    %v69 = vld [vmem:[#allocation6 + $0x90] sm:$0xff]
    %v70 = vld [vmem:[#allocation6 + $0x98] sm:$0xff]
    %v71 = vld [vmem:[#allocation6 + $0xa0] sm:$0xff]
    %v72 = vld [vmem:[#allocation6 + $0xa8] sm:$0xff]
    %v73 = vld [vmem:[#allocation6 + $0xb0] sm:$0x1]
    %v74 = vld [vmem:[#allocation6 + $0xb1] sm:$0x1]
    %v75 = vld [vmem:[#allocation6 + $0xb2] sm:$0x1]
    %v76 = vld [vmem:[#allocation6 + $0xb3] sm:$0x1]
    %v77 = vld [vmem:[#allocation2] sm:$0xff]
    %v78 = vlaneseq
    %v79 = vshrl.u32 %v78, 7
    %v80 = vsub.s32 0, %v79
    %v81 = vrot.slane %v73, %v80
    %vm82 = vcmask 261120
    %v84 = vsel %vm82, %v77, 0
    %86 = vmatprep.subr.mxu0 0.0
    %87 = vmatpush1.msra.mxu0 %v51
    %88 = vmatprep.subr.mxu0 0.0
    %89 = vmatpush1.msra.mxu0 %v52
    %90 = vmatprep.subr.mxu0 0.0
    %91 = vmatpush1.msra.mxu0 %v53
    %92 = vmatprep.subr.mxu0 0.0
    %93 = vmatpush1.msra.mxu0 %v54
    %94 = vmatprep.subr.mxu0 0.0
    %95 = vmatpush1.msra.mxu0 0.0
    %96 = vmatprep.subr.mxu0 0.0
    %97 = vmatpush1.msra.mxu0 0.0
    %98 = vmatprep.subr.mxu0 0.0
    %99 = vmatpush1.msra.mxu0 0.0
    %100 = vmatprep.subr.mxu0 0.0
    %101 = vmatpush1.msra.mxu0 0.0
    %102 = vmatprep.subr.mxu0 0.0
    %103 = vmatpush1.msra.mxu0 0.0
    %104 = vmatprep.subr.mxu0 0.0
    %105 = vmatpush1.msra.mxu0 0.0
    %106 = vmatprep.subr.mxu0 0.0
    %107 = vmatpush1.msra.mxu0 0.0
    %108 = vmatprep.subr.mxu0 0.0
    %109 = vmatpush1.msra.mxu0 0.0
    %110 = vmatprep.subr.mxu0 0.0
    %111 = vmatpush1.msra.mxu0 0.0
    %112 = vmatprep.subr.mxu0 0.0
    %113 = vmatpush1.msra.mxu0 0.0
    %114 = vmatprep.subr.mxu0 0.0
    %115 = vmatpush1.msra.mxu0 0.0
    %116 = vmatprep.subr.mxu0 0.0
    %117 = vmatpush1.msra.mxu0 0.0
    %118 = vmatprep.subr.mxu0 0.0
    %119 = vmatpush1.msra.mxu0 0.0
    %120 = vmatprep.subr.mxu0 0.0
    %121 = vmatpush1.msra.mxu0 0.0
    %122 = vmatprep.subr.mxu0 0.0
    %123 = vmatpush1.msra.mxu0 0.0
    %124 = vmatprep.subr.mxu0 0.0
    %125 = vmatpush1.msra.mxu0 0.0
    %126 = vmatprep.subr.mxu0 0.0
    %127 = vmatpush1.msra.mxu0 0.0
    %128 = vmatprep.subr.mxu0 0.0
    %129 = vmatpush1.msra.mxu0 0.0
    %130 = vmatprep.subr.mxu0 0.0
    %131 = vmatpush1.msra.mxu0 0.0
    %132 = vmatprep.subr.mxu0 0.0
    %133 = vmatpush1.msra.mxu0 0.0
    %134 = vmatprep.subr.mxu0 0.0
    %135 = vmatpush1.msra.mxu0 0.0
    %136 = vmatprep.subr.mxu0 0.0
    %137 = vmatpush1.msra.mxu0 0.0
    %138 = vmatprep.subr.mxu0 0.0
    %139 = vmatpush1.msra.mxu0 0.0
    %140 = vmatprep.subr.mxu0 0.0
    %141 = vmatpush1.msra.mxu0 0.0
    %142 = vmatprep.subr.mxu0 0.0
    %143 = vmatpush1.msra.mxu0 0.0
    %144 = vmatprep.subr.mxu0 0.0
    %145 = vmatpush1.msra.mxu0 0.0
    %146 = vmatprep.subr.mxu0 0.0
    %147 = vmatpush1.msra.mxu0 0.0
    %148 = vmatprep.subr.mxu0 0.0
    %149 = vmatpush1.msra.mxu0 0.0
    %150 = vmatprep.mubr.f32.mxu0 0.0
    %151 = vmatmul.mubr.f32.gmra.mrb[0].mxu0 %v84
    %v152 = vpop.f32.mrb[0].mxu0
    %v153 = vadd.f32 %v81, %v152
    %v154 = vpop.f32.mrb[0].mxu0
    %155 = vdwg.mxu0
    %v156 = vld [vmem:[#allocation4] sm:$0xff]
    %v157 = vlaneseq
    %v158 = vshrl.u32 %v157, 7
    %v159 = vsub.s32 0, %v158
    %v160 = vrot.slane %v74, %v159
    %vm161 = vcmask 130048
    %v163 = vsel %vm161, %v156, 0
    %165 = vmatprep.subr.mxu0 0.0
    %166 = vmatpush1.msra.mxu0 %v55
    %167 = vmatprep.subr.mxu0 0.0
    %168 = vmatpush1.msra.mxu0 %v56
    %169 = vmatprep.subr.mxu0 0.0
    %170 = vmatpush1.msra.mxu0 0.0
    %171 = vmatprep.subr.mxu0 0.0
    %172 = vmatpush1.msra.mxu0 0.0
    %173 = vmatprep.subr.mxu0 0.0
    %174 = vmatpush1.msra.mxu0 0.0
    %175 = vmatprep.subr.mxu0 0.0
    %176 = vmatpush1.msra.mxu0 0.0
    %177 = vmatprep.subr.mxu0 0.0
    %178 = vmatpush1.msra.mxu0 0.0
    %179 = vmatprep.subr.mxu0 0.0
    %180 = vmatpush1.msra.mxu0 0.0
    %181 = vmatprep.subr.mxu0 0.0
    %182 = vmatpush1.msra.mxu0 0.0
    %183 = vmatprep.subr.mxu0 0.0
    %184 = vmatpush1.msra.mxu0 0.0
    %185 = vmatprep.subr.mxu0 0.0
    %186 = vmatpush1.msra.mxu0 0.0
    %187 = vmatprep.subr.mxu0 0.0
    %188 = vmatpush1.msra.mxu0 0.0
    %189 = vmatprep.subr.mxu0 0.0
    %190 = vmatpush1.msra.mxu0 0.0
    %191 = vmatprep.subr.mxu0 0.0
    %192 = vmatpush1.msra.mxu0 0.0
    %193 = vmatprep.subr.mxu0 0.0
    %194 = vmatpush1.msra.mxu0 0.0
    %195 = vmatprep.subr.mxu0 0.0
    %196 = vmatpush1.msra.mxu0 0.0
    %197 = vmatprep.subr.mxu0 0.0
    %198 = vmatpush1.msra.mxu0 0.0
    %199 = vmatprep.subr.mxu0 0.0
    %200 = vmatpush1.msra.mxu0 0.0
    %201 = vmatprep.subr.mxu0 0.0
    %202 = vmatpush1.msra.mxu0 0.0
    %203 = vmatprep.subr.mxu0 0.0
    %204 = vmatpush1.msra.mxu0 0.0
    %205 = vmatprep.subr.mxu0 0.0
    %206 = vmatpush1.msra.mxu0 0.0
    %207 = vmatprep.subr.mxu0 0.0
    %208 = vmatpush1.msra.mxu0 0.0
    %209 = vmatprep.subr.mxu0 0.0
    %210 = vmatpush1.msra.mxu0 0.0
    %211 = vmatprep.subr.mxu0 0.0
    %212 = vmatpush1.msra.mxu0 0.0
    %213 = vmatprep.subr.mxu0 0.0
    %214 = vmatpush1.msra.mxu0 0.0
    %215 = vmatprep.subr.mxu0 0.0
    %216 = vmatpush1.msra.mxu0 0.0
    %217 = vmatprep.subr.mxu0 0.0
    %218 = vmatpush1.msra.mxu0 0.0
    %219 = vmatprep.subr.mxu0 0.0
    %220 = vmatpush1.msra.mxu0 0.0
    %221 = vmatprep.subr.mxu0 0.0
    %222 = vmatpush1.msra.mxu0 0.0
    %223 = vmatprep.subr.mxu0 0.0
    %224 = vmatpush1.msra.mxu0 0.0
    %225 = vmatprep.subr.mxu0 0.0
    %226 = vmatpush1.msra.mxu0 0.0
    %227 = vmatprep.subr.mxu0 0.0
    %228 = vmatpush1.msra.mxu0 0.0
    %229 = vmatprep.mubr.f32.mxu0 0.0
    %230 = vmatmul.mubr.f32.gmra.mrb[0].mxu0 %v163
    %v231 = vpop.f32.mrb[0].mxu0
    %v232 = vadd.f32 %v160, %v231
    %v233 = vpop.f32.mrb[0].mxu0
    %234 = vdwg.mxu0
    %v235 = vmax.f32 %v232, 0.0
    %v236 = vlaneseq
    %v237 = vshrl.u32 %v236, 7
    %v238 = vsub.s32 0, %v237
    %v239 = vrot.slane %v75, %v238
    %240 = vmatprep.subr.mxu0 0.0
    %241 = vmatpush1.msra.mxu0 %v57
    %242 = vmatprep.subr.mxu0 0.0
    %243 = vmatpush1.msra.mxu0 %v58
    %244 = vmatprep.subr.mxu0 0.0
    %245 = vmatpush1.msra.mxu0 %v59
    %246 = vmatprep.subr.mxu0 0.0
    %247 = vmatpush1.msra.mxu0 %v60
    %248 = vmatprep.subr.mxu0 0.0
    %249 = vmatpush1.msra.mxu0 %v61
    %250 = vmatprep.subr.mxu0 0.0
    %251 = vmatpush1.msra.mxu0 %v62
    %252 = vmatprep.subr.mxu0 0.0
    %253 = vmatpush1.msra.mxu0 %v63
    %254 = vmatprep.subr.mxu0 0.0
    %255 = vmatpush1.msra.mxu0 %v64
    %256 = vmatprep.subr.mxu0 0.0
    %257 = vmatpush1.msra.mxu0 %v65
    %258 = vmatprep.subr.mxu0 0.0
    %259 = vmatpush1.msra.mxu0 %v66
    %260 = vmatprep.subr.mxu0 0.0
    %261 = vmatpush1.msra.mxu0 %v67
    %262 = vmatprep.subr.mxu0 0.0
    %263 = vmatpush1.msra.mxu0 %v68
    %264 = vmatprep.subr.mxu0 0.0
    %265 = vmatpush1.msra.mxu0 %v69
    %266 = vmatprep.subr.mxu0 0.0
    %267 = vmatpush1.msra.mxu0 %v70
    %268 = vmatprep.subr.mxu0 0.0
    %269 = vmatpush1.msra.mxu0 %v71
    %270 = vmatprep.subr.mxu0 0.0
    %271 = vmatpush1.msra.mxu0 %v72
    %272 = vmatprep.subr.mxu0 0.0
    %273 = vmatpush1.msra.mxu0 0.0
    %274 = vmatprep.subr.mxu0 0.0
    %275 = vmatpush1.msra.mxu0 0.0
    %276 = vmatprep.subr.mxu0 0.0
    %277 = vmatpush1.msra.mxu0 0.0
    %278 = vmatprep.subr.mxu0 0.0
    %279 = vmatpush1.msra.mxu0 0.0
    %280 = vmatprep.subr.mxu0 0.0
    %281 = vmatpush1.msra.mxu0 0.0
    %282 = vmatprep.subr.mxu0 0.0
    %283 = vmatpush1.msra.mxu0 0.0
    %284 = vmatprep.subr.mxu0 0.0
    %285 = vmatpush1.msra.mxu0 0.0
    %286 = vmatprep.subr.mxu0 0.0
    %287 = vmatpush1.msra.mxu0 0.0
    %288 = vmatprep.subr.mxu0 0.0
    %289 = vmatpush1.msra.mxu0 0.0
    %290 = vmatprep.subr.mxu0 0.0
    %291 = vmatpush1.msra.mxu0 0.0
    %292 = vmatprep.subr.mxu0 0.0
    %293 = vmatpush1.msra.mxu0 0.0
    %294 = vmatprep.subr.mxu0 0.0
    %295 = vmatpush1.msra.mxu0 0.0
    %296 = vmatprep.subr.mxu0 0.0
    %297 = vmatpush1.msra.mxu0 0.0
    %298 = vmatprep.subr.mxu0 0.0
    %299 = vmatpush1.msra.mxu0 0.0
    %300 = vmatprep.subr.mxu0 0.0
    %301 = vmatpush1.msra.mxu0 0.0
    %302 = vmatprep.subr.mxu0 0.0
    %303 = vmatpush1.msra.mxu0 0.0
    %304 = vmatprep.mubr.f32.mxu0 0.0
    %305 = vmatmul.mubr.f32.gmra.mrb[0].mxu0 %v235
    %v306 = vpop.f32.mrb[0].mxu0
    %v307 = vadd.f32 %v239, %v306
    %v308 = vpop.f32.mrb[0].mxu0
    %309 = vdwg.mxu0
    %v310 = vmul.f32 %v153, %v153
    %311 = vadd.xlane.f32.xlu0 %v310
    %v312 = vpop.xlane.xlu0 %311
    %v313 = vrsqrt.pop %v312
    %v314 = vlaneseq
    %v315 = vshrl.u32 %v314, 7
    %v316 = vsub.s32 0, %v315
    %v317 = vrot.slane %v76, %v316
    %v318 = vmul.f32 %v317, %v313
    %v319 = vmul.f32 %v153, %v318
    %v320 = vmul.f32 %v307, %v307
    %321 = vadd.xlane.f32.xlu0 %v320
    %v322 = vpop.xlane.xlu0 %321
    %v323 = vrsqrt.pop %v322
    %v324 = vmul.f32 %v307, %v323
    %325 = vmatprep.subr.mxu0 0.0
    %326 = vmatpush1.xpose.msra.mxu0 %v324
    %327 = vmatprep.subr.mxu0 0.0
    %328 = vmatpush1.xpose.msra.mxu0 0.0
    %329 = vmatprep.subr.mxu0 0.0
    %330 = vmatpush1.xpose.msra.mxu0 0.0
    %331 = vmatprep.subr.mxu0 0.0
    %332 = vmatpush1.xpose.msra.mxu0 0.0
    %333 = vmatprep.subr.mxu0 0.0
    %334 = vmatpush1.xpose.msra.mxu0 0.0
    %335 = vmatprep.subr.mxu0 0.0
    %336 = vmatpush1.xpose.msra.mxu0 0.0
    %337 = vmatprep.subr.mxu0 0.0
    %338 = vmatpush1.xpose.msra.mxu0 0.0
    %339 = vmatprep.subr.mxu0 0.0
    %340 = vmatpush1.xpose.msra.mxu0 0.0
    %341 = vmatprep.subr.mxu0 0.0
    %342 = vmatpush1.xpose.msra.mxu0 0.0
    %343 = vmatprep.subr.mxu0 0.0
    %344 = vmatpush1.xpose.msra.mxu0 0.0
    %345 = vmatprep.subr.mxu0 0.0
    %346 = vmatpush1.xpose.msra.mxu0 0.0
    %347 = vmatprep.subr.mxu0 0.0
    %348 = vmatpush1.xpose.msra.mxu0 0.0
    %349 = vmatprep.subr.mxu0 0.0
    %350 = vmatpush1.xpose.msra.mxu0 0.0
    %351 = vmatprep.subr.mxu0 0.0
    %352 = vmatpush1.xpose.msra.mxu0 0.0
    %353 = vmatprep.subr.mxu0 0.0
    %354 = vmatpush1.xpose.msra.mxu0 0.0
    %355 = vmatprep.subr.mxu0 0.0
    %356 = vmatpush1.xpose.msra.mxu0 0.0
    %357 = vmatprep.subr.mxu0 0.0
    %358 = vmatpush1.xpose.msra.mxu0 0.0
    %359 = vmatprep.subr.mxu0 0.0
    %360 = vmatpush1.xpose.msra.mxu0 0.0
    %361 = vmatprep.subr.mxu0 0.0
    %362 = vmatpush1.xpose.msra.mxu0 0.0
    %363 = vmatprep.subr.mxu0 0.0
    %364 = vmatpush1.xpose.msra.mxu0 0.0
    %365 = vmatprep.subr.mxu0 0.0
    %366 = vmatpush1.xpose.msra.mxu0 0.0
    %367 = vmatprep.subr.mxu0 0.0
    %368 = vmatpush1.xpose.msra.mxu0 0.0
    %369 = vmatprep.subr.mxu0 0.0
    %370 = vmatpush1.xpose.msra.mxu0 0.0
    %371 = vmatprep.subr.mxu0 0.0
    %372 = vmatpush1.xpose.msra.mxu0 0.0
    %373 = vmatprep.subr.mxu0 0.0
    %374 = vmatpush1.xpose.msra.mxu0 0.0
    %375 = vmatprep.subr.mxu0 0.0
    %376 = vmatpush1.xpose.msra.mxu0 0.0
    %377 = vmatprep.subr.mxu0 0.0
    %378 = vmatpush1.xpose.msra.mxu0 0.0
    %379 = vmatprep.subr.mxu0 0.0
    %380 = vmatpush1.xpose.msra.mxu0 0.0
    %381 = vmatprep.subr.mxu0 0.0
    %382 = vmatpush1.xpose.msra.mxu0 0.0
    %383 = vmatprep.subr.mxu0 0.0
    %384 = vmatpush1.xpose.msra.mxu0 0.0
    %385 = vmatprep.subr.mxu0 0.0
    %386 = vmatpush1.xpose.msra.mxu0 0.0
    %387 = vmatprep.subr.mxu0 0.0
    %388 = vmatpush1.xpose.msra.mxu0 0.0
    %389 = vmatprep.mubr.f32.mxu0 0.0
    %390 = vmatmul.mubr.f32.gmra.mrb[0].mxu0 %v319
    %v391 = vpop.f32.mrb[0].mxu0
    %v392 = vadd.f32 0.0, %v391
    %v393 = vpop.f32.mrb[0].mxu0
    %394 = vdwg.mxu0
    %vm395 = vcmask 64512
    %396 = vst.msk [vmem:[%s3] sm:$0xff] %vm395, %v392
    // Predicated region
    $region26: #{accept_forward.1} parent=1 // pred_check
      _
    $region27: #{accept_forward.1} parent=1 // pred_check_branch
      %398 = sbr.rel (0) target = $region29
    $region28: #{accept_forward.1} parent=1 // pred_region
      _
    $region29: #{accept_forward.1} parent=1 // pred_fallthru
      _
    // Predicated region
    $region30: #{accept_forward.1} parent=1 // pred_check
      _
    $region31: #{accept_forward.1} parent=1 // pred_check_branch
      %400 = sbr.rel (0) target = $region33
    $region32: #{accept_forward.1} parent=1 // pred_region
      _
    $region33: #{accept_forward.1} parent=1 // pred_fallthru
      _
    %401 = vsyncpa [#allocation3], 1
    %402 = vsyncpa [#allocation5], 1

</llo_original>
